<compile_context>
chip_gen: v6e
topology: v6e:2x2x1
jax: 0.10.0
libtpu: 0.0.40
codegen_flags: <defaults>
</compile_context>

<pallas_src>
import jax
import jax.numpy as jnp
from jax import lax
from jax.experimental import pallas as pl
from jax.experimental.pallas import tpu as pltpu


def _projector_kernel(fm_ref, key_ref, vtT_ref, wq_ref, bq_ref, out_ref):
    # fm_ref : (1, C, pt)  feature-map tile, native channels-first layout (f32)
    # key_ref: (1, T, C)   hoisted key projection (mxu dtype)
    # vtT_ref: (1, C, T)   pre-transposed visual tokens (mxu dtype)
    # wq_ref : (C, C)      query weight, PyTorch (out, in) layout (mxu dtype)
    # bq_ref : (C, 1)      query bias as a column vector (f32)
    # out_ref: (1, C, pt)
    mxu_dt = wq_ref.dtype
    fm = fm_ref[0]                                           # (C, pt) f32

    # qT = Wq @ fm + bq  -> (C, pt); bf16 operands, f32 accumulation on MXU.
    qT = lax.dot_general(
        wq_ref[...], fm.astype(mxu_dt),
        dimension_numbers=(((1,), (0,)), ((), ())),
        preferred_element_type=jnp.float32) + bq_ref[...]

    # sT = key @ qT -> (T, pt): score of token t at position p.
    # PyTorch softmax(dim=2) over tokens == softmax over axis 0 here.
    sT = lax.dot_general(
        key_ref[0], qT.astype(mxu_dt),
        dimension_numbers=(((1,), (0,)), ((), ())),
        preferred_element_type=jnp.float32)
    sT = sT - jnp.max(sT, axis=0, keepdims=True)
    e = jnp.exp(sT)
    # Exact divide (the approximate EUP reciprocal caused the mismatch).
    p = e / jnp.sum(e, axis=0, keepdims=True)                # (T, pt)

    # attn^T = vt^T @ p -> (C, pt); plain MXU matmul, no operand transposes.
    attnT = lax.dot_general(
        vtT_ref[0], p.astype(mxu_dt),
        dimension_numbers=(((1,), (0,)), ((), ())),
        preferred_element_type=jnp.float32)

    out_ref[0] = (fm + attnT).astype(out_ref.dtype)


def _plan(P, C, T, mxu_itemsize):
    """Pick the lane-dense P tile, padded P, and an explicit scoped-VMEM limit."""
    f32 = 4

    def vmem_bytes(pt):
        io = 2 * (2 * C * pt * f32)                      # fm + out tiles, double-buffered
        side = 2 * (2 * T * C * mxu_itemsize)            # key + vt^T, double-buffered
        side += 2 * (C * C * mxu_itemsize + C * f32)     # Wq + bq
        tmp = 2 * C * pt * f32 + 3 * T * pt * f32        # qT/attnT + score temporaries
        tmp += (C + T) * pt * mxu_itemsize               # low-precision casts of fm and p
        return io + side + tmp

    # Assume the smallest-VMEM generation (v7x: 64 MiB) unless the runtime
    # tells us otherwise (128 MiB on v5e / v6e -> larger tiles allowed).
    vmem_cap = 64 << 20
    try:
        vmem_cap = int(pltpu.get_tpu_info().vmem_capacity_bytes)
    except Exception:
        pass
    budget = vmem_cap // 2   # headroom for compiler scratch / deeper pipelining

    if P <= 512 and vmem_bytes(P) <= budget:
        pt, P_pad = P, P     # single full-P tile; full-dim blocks need no 128 alignment
    else:
        p128 = -(-P // 128) * 128
        pt = 128
        for cand in (1024, 512, 256, 128):   # big tiles amortize ~0.35 us/grid-step
            if cand <= p128 and vmem_bytes(cand) <= budget:
                pt = cand
                break
        P_pad = -(-P // pt) * pt             # pad -> every tile stays lane-dense

    # Default scoped VMEM is only 16 MiB (v5e) / 32 MiB (v6e, v7x): raise it.
    vmem_limit = int(min(max(2 * vmem_bytes(pt), 32 << 20), vmem_cap))
    return pt, P_pad, vmem_limit


def projector_forward(feature_map, visual_token, wq, bq, wk, bk,
                      *, mxu_dtype=jnp.bfloat16):
    """feature_map: (B, C, P); visual_token: (B, T, C) -> (B, C, P)."""
    B, C, P = feature_map.shape
    T = visual_token.shape[1]

    # ---- grid-invariant work hoisted out of the P-tile loop ----------------
    # Key projection: one small (B,T,C)x(C,C) matmul per call (XLA) instead of
    # once per P tile inside the kernel.
    key = (visual_token @ wk.T + bk).astype(mxu_dtype)               # (B, T, C)
    # Pre-transposed visual tokens so attn^T = vt^T @ p is a plain MXU matmul.
    vtT = jnp.transpose(visual_token, (0, 2, 1)).astype(mxu_dtype)   # (B, C, T)
    wq_m = wq.astype(mxu_dtype)
    bq_col = bq.astype(jnp.float32).reshape(C, 1)

    pt, P_pad, vmem_limit = _plan(P, C, T, jnp.dtype(mxu_dtype).itemsize)
    fm = feature_map
    if P_pad != P:
        fm = jnp.pad(feature_map, ((0, 0), (0, 0), (0, P_pad - P)))

    out = pl.pallas_call(
        _projector_kernel,
        out_shape=jax.ShapeDtypeStruct((B, C, P_pad), feature_map.dtype),
        grid_spec=pltpu.PrefetchScalarGridSpec(
            num_scalar_prefetch=0,
            grid=(B, P_pad // pt),
            in_specs=[
                pl.BlockSpec((1, C, pt), lambda b, p: (b, 0, p)),   # feature-map tile
                pl.BlockSpec((1, T, C), lambda b, p: (b, 0, 0)),    # key (invariant in p)
                pl.BlockSpec((1, C, T), lambda b, p: (b, 0, 0)),    # vt^T (invariant in p)
                pl.BlockSpec((C, C), lambda b, p: (0, 0)),          # W_query
                pl.BlockSpec((C, 1), lambda b, p: (0, 0)),          # b_query (column)
            ],
            out_specs=pl.BlockSpec((1, C, pt), lambda b, p: (b, 0, p)),
        ),
        compiler_params=pltpu.CompilerParams(
            dimension_semantics=("parallel", "parallel"),
            vmem_limit_bytes=vmem_limit),
    )(fm, key, vtT, wq_m, bq_col)

    return out if P_pad == P else out[..., :P]


def _reference(feature_map, visual_token, wq, bq, wk, bk):
    # Pure-JAX (f32) reference of the PyTorch forward.
    fm_t = jnp.transpose(feature_map, (0, 2, 1))             # (B, P, C)
    q = fm_t @ wq.T + bq                                     # (B, P, C)
    k = visual_token @ wk.T + bk                             # (B, T, C)
    s = jnp.einsum("bpc,btc->bpt", q, k)
    p = jax.nn.softmax(s, axis=2)
    attn = jnp.einsum("bpt,btc->bpc", p, visual_token)
    return feature_map + jnp.transpose(attn, (0, 2, 1))


if __name__ == "__main__":
    key0 = jax.random.PRNGKey(0)
    B, C, H, W, T = 2, 32, 16, 16, 8
    P = H * W

    k1, k2, k3, k4, k5, k6 = jax.random.split(key0, 6)
    feature_map = jax.random.normal(k1, (B, C, P), dtype=jnp.float32)
    visual_token = jax.random.normal(k2, (B, T, C), dtype=jnp.float32)

    # nn.Linear-shaped params: (out, in) weights + (out,) biases.
    bound = 1.0 / (C ** 0.5)
    wq = jax.random.uniform(k3, (C, C), jnp.float32, -bound, bound)
    bq = jax.random.uniform(k4, (C,), jnp.float32, -bound, bound)
    wk = jax.random.uniform(k5, (C, C), jnp.float32, -bound, bound)
    bk = jax.random.uniform(k6, (C,), jnp.float32, -bound, bound)

    ref = _reference(feature_map, visual_token, wq, bq, wk, bk)

    # Exact-precision path: proves the kernel math matches the PyTorch forward.
    out_f32 = jax.block_until_ready(
        projector_forward(feature_map, visual_token, wq, bq, wk, bk,
                          mxu_dtype=jnp.float32))
    assert out_f32.shape == (B, C, P)
    assert jnp.allclose(out_f32, ref, atol=1e-4, rtol=1e-4), "f32 kernel mismatch"

    # Default performance path: bf16 MXU operands, f32 accumulation.  The
    # looser band only reflects bf16 operand rounding propagated through the
    # exp() of the attention scores; exact math is verified by the f32 run.
    out_bf16 = jax.block_until_ready(
        projector_forward(feature_map, visual_token, wq, bq, wk, bk))
    assert out_bf16.shape == (B, C, P)
    assert jnp.allclose(out_bf16, ref, atol=1e-1, rtol=1e-1), "bf16 kernel mismatch"

    print("KERNEL_OK")
</pallas_src>

<mosaic_0001>
module attributes {stable_mosaic.version = 11 : i64} {
  func.func @_projector_kernel(%arg0: i32, %arg1: i32, %arg2: memref<1x32x256xf32, #tpu.memory_space<vmem>>, %arg3: memref<1x8x32xf32, #tpu.memory_space<vmem>>, %arg4: memref<1x32x8xf32, #tpu.memory_space<vmem>>, %arg5: memref<32x32xf32, #tpu.memory_space<vmem>>, %arg6: memref<32x1xf32, #tpu.memory_space<vmem>>, %arg7: memref<1x32x256xf32, #tpu.memory_space<vmem>>) attributes {dimension_semantics = [#tpu.dimension_semantics<parallel>, #tpu.dimension_semantics<parallel>], iteration_bounds = array<i64: 2, 1>, scalar_prefetch = 0 : i64, scratch_operands = 0 : i64, tpu.core_type = #tpu.core_type<tc>, window_params = [{transform_indices = @transform_0, window_bounds = array<i64: 1, 32, 256>}, {transform_indices = @transform_1, window_bounds = array<i64: 1, 8, 32>}, {transform_indices = @transform_2, window_bounds = array<i64: 1, 32, 8>}, {pipeline_mode = #tpu.pipeline_mode<synchronous>, transform_indices = @transform_3, window_bounds = array<i64: 32, 32>}, {pipeline_mode = #tpu.pipeline_mode<synchronous>, transform_indices = @transform_4, window_bounds = array<i64: 32, 1>}, {transform_indices = @transform_5, window_bounds = array<i64: 1, 32, 256>}]} {
    %c0 = arith.constant 0 : index
    %c0_0 = arith.constant 0 : index
    %c0_1 = arith.constant 0 : index
    %0 = vector.load %arg2[%c0, %c0_0, %c0_1] : memref<1x32x256xf32, #tpu.memory_space<vmem>>, vector<1x32x256xf32>
    %1 = vector.shape_cast %0 : vector<1x32x256xf32> to vector<32x256xf32>
    %c0_2 = arith.constant 0 : index
    %c0_3 = arith.constant 0 : index
    %2 = vector.load %arg5[%c0_2, %c0_3] : memref<32x32xf32, #tpu.memory_space<vmem>>, vector<32x32xf32>
    %cst = arith.constant dense<0.000000e+00> : vector<32x256xf32>
    %3 = tpu.matmul %2, %1, %cst {dimension_numbers = #tpu.dot_dimension_numbers<[1], [0], [0], [1], [0, 0, 1, 1], [], []>} : vector<32x32xf32>, vector<32x256xf32>, vector<32x256xf32> -> vector<32x256xf32>
    %c0_4 = arith.constant 0 : index
    %c0_5 = arith.constant 0 : index
    %4 = vector.load %arg6[%c0_4, %c0_5] : memref<32x1xf32, #tpu.memory_space<vmem>>, vector<32x1xf32>
    %5 = vector.broadcast %4 : vector<32x1xf32> to vector<32x256xf32>
    %6 = arith.addf %3, %5 : vector<32x256xf32>
    %c0_6 = arith.constant 0 : index
    %c0_7 = arith.constant 0 : index
    %c0_8 = arith.constant 0 : index
    %7 = vector.load %arg3[%c0_6, %c0_7, %c0_8] : memref<1x8x32xf32, #tpu.memory_space<vmem>>, vector<1x8x32xf32>
    %8 = vector.shape_cast %7 : vector<1x8x32xf32> to vector<8x32xf32>
    %cst_9 = arith.constant dense<0.000000e+00> : vector<8x256xf32>
    %9 = tpu.matmul %8, %6, %cst_9 {dimension_numbers = #tpu.dot_dimension_numbers<[1], [0], [0], [1], [0, 0, 1, 1], [], []>} : vector<8x32xf32>, vector<32x256xf32>, vector<8x256xf32> -> vector<8x256xf32>
    %cst_10 = arith.constant dense<0xFF800000> : vector<256xf32>
    %10 = vector.multi_reduction <maximumf>, %9, %cst_10 [0] : vector<8x256xf32> to vector<256xf32>
    %11 = vector.shape_cast %10 : vector<256xf32> to vector<1x256xf32>
    %12 = vector.broadcast %11 : vector<1x256xf32> to vector<8x256xf32>
    %13 = arith.subf %9, %12 : vector<8x256xf32>
    %14 = math.exp %13 : vector<8x256xf32>
    %cst_11 = arith.constant dense<0.000000e+00> : vector<256xf32>
    %15 = vector.multi_reduction <add>, %14, %cst_11 [0] : vector<8x256xf32> to vector<256xf32>
    %16 = vector.shape_cast %15 : vector<256xf32> to vector<1x256xf32>
    %17 = vector.broadcast %16 : vector<1x256xf32> to vector<8x256xf32>
    %18 = arith.divf %14, %17 : vector<8x256xf32>
    %c0_12 = arith.constant 0 : index
    %c0_13 = arith.constant 0 : index
    %c0_14 = arith.constant 0 : index
    %19 = vector.load %arg4[%c0_12, %c0_13, %c0_14] : memref<1x32x8xf32, #tpu.memory_space<vmem>>, vector<1x32x8xf32>
    %20 = vector.shape_cast %19 : vector<1x32x8xf32> to vector<32x8xf32>
    %cst_15 = arith.constant dense<0.000000e+00> : vector<32x256xf32>
    %21 = tpu.matmul %20, %18, %cst_15 {dimension_numbers = #tpu.dot_dimension_numbers<[1], [0], [0], [1], [0, 0, 1, 1], [], []>} : vector<32x8xf32>, vector<8x256xf32>, vector<32x256xf32> -> vector<32x256xf32>
    %22 = arith.addf %1, %21 : vector<32x256xf32>
    %c0_16 = arith.constant 0 : index
    %c0_17 = arith.constant 0 : index
    %c0_18 = arith.constant 0 : index
    %23 = vector.load %arg7[%c0_16, %c0_17, %c0_18] : memref<1x32x256xf32, #tpu.memory_space<vmem>>, vector<1x32x256xf32>
    %24 = vector.shape_cast %23 : vector<1x32x256xf32> to vector<32x256xf32>
    %25 = vector.shape_cast %22 : vector<32x256xf32> to vector<1x32x256xf32>
    tpu.vector_store %arg7[%c0_16, %c0_17, %c0_18], %25 {strides = array<i32>} : memref<1x32x256xf32, #tpu.memory_space<vmem>>, vector<1x32x256xf32>,
    return
  }
  func.func @transform_0(%arg0: i32, %arg1: i32) -> (i32, i32, i32) {
    %c0_i32 = arith.constant 0 : i32
    %c0_i32_0 = arith.constant 0 : i32
    return %arg0, %c0_i32, %arg1 : i32, i32, i32
  }
  func.func @transform_1(%arg0: i32, %arg1: i32) -> (i32, i32, i32) {
    %c0_i32 = arith.constant 0 : i32
    %c0_i32_0 = arith.constant 0 : i32
    %c0_i32_1 = arith.constant 0 : i32
    return %arg0, %c0_i32, %c0_i32_0 : i32, i32, i32
  }
  func.func @transform_2(%arg0: i32, %arg1: i32) -> (i32, i32, i32) {
    %c0_i32 = arith.constant 0 : i32
    %c0_i32_0 = arith.constant 0 : i32
    %c0_i32_1 = arith.constant 0 : i32
    return %arg0, %c0_i32, %c0_i32_0 : i32, i32, i32
  }
  func.func @transform_3(%arg0: i32, %arg1: i32) -> (i32, i32) {
    %c0_i32 = arith.constant 0 : i32
    %c0_i32_0 = arith.constant 0 : i32
    %c0_i32_1 = arith.constant 0 : i32
    return %c0_i32, %c0_i32_0 : i32, i32
  }
  func.func @transform_4(%arg0: i32, %arg1: i32) -> (i32, i32) {
    %c0_i32 = arith.constant 0 : i32
    %c0_i32_0 = arith.constant 0 : i32
    %c0_i32_1 = arith.constant 0 : i32
    return %c0_i32, %c0_i32_0 : i32, i32
  }
  func.func @transform_5(%arg0: i32, %arg1: i32) -> (i32, i32, i32) {
    %c0_i32 = arith.constant 0 : i32
    %c0_i32_0 = arith.constant 0 : i32
    return %arg0, %c0_i32, %arg1 : i32, i32, i32
  }
}

</mosaic_0001>

<llo_original>
// kernel: tpu_custom_call.1
$region0: #{tpu_custom_call.1}
  #allocation0 [shape = 'u32[]', space=smem, size = 0x4, offset = 0x4, fixed_abs, tag = 'smem constant byte address 0x4 - core index']
  #allocation1 [shape = 'u32[144,128]{1,0:T(1,128)}', space=vmem, size = 0x12000, scoped, tag = 'internal scratch']
  %s0 = inlined_call_operand.hbm [shape: f32[2,32,256], index: 0, kind: input, shape index: {}]
  %s1 = inlined_call_operand.vmem [shape: f32[2,8,32], index: 1, kind: input, shape index: {}]
  %s2 = inlined_call_operand.vmem [shape: f32[2,32,8], index: 2, kind: input, shape index: {}]
  %s3 = inlined_call_operand.vmem [shape: f32[32,32], index: 3, kind: input, shape index: {}]
  %s4 = inlined_call_operand.vmem [shape: f32[32,1], index: 4, kind: input, shape index: {}]
  %s5 = inlined_call_operand.hbm [shape: f32[2,32,256], index: 5, kind: output, shape index: {}]
  %s6 = sld [smem:[#allocation0]]
  $region57: #{tpu_custom_call.1} parent=0
    _
  %s8 = ssub.s32 1, %s6
  %s9 = scalar_select 0, %s8, %s6
  $region1: #{tpu_custom_call.1} parent=0
    #allocation2 [shape = 'u8[65536]{0}', space=vmem, size = 0x10000, scoped, tag = 'input window, operand 0']
    #allocation3 [shape = 's32[2]{0}', space=sflag, size = 0x8, scoped, tag = 'scoped memory for tpu_custom_call.1']
    #allocation4 [shape = 's32[2]{0}', space=sflag, size = 0x8, scoped, tag = 'scoped memory for tpu_custom_call.1']
    #allocation5 [shape = 'u8[65536]{0}', space=vmem, size = 0x10000, scoped, tag = 'output window, operand 0']
    %10 = vsyncpa [#allocation3], 0
    %s11 = scalar_lea.sflag [#allocation3], 1
    %12 = vsyncpa %s11, 0
    %13 = vsyncpa [#allocation4], 0
    %s14 = scalar_lea.sflag [#allocation4], 1
    %15 = vsyncpa %s14, 0
    loop: start=0, step=1, limit=4
    $region2: #{tpu_custom_call.1} parent=1 // loop_pre_header
      _
    $region3: #{tpu_custom_call.1} parent=1 // loop_header
      %s17 = sphi 0, %s21
      %p18 = scmp.ge.s32.totalorder %s17, 4
      %s24 = sphi 0, %s36
      %s25 = sphi 0, %s32
      %s26 = sphi 0, %s24
      %s27 = sphi 0, %s25
      %s28 = sphi 0, %s26
      %s29 = sphi 0, %s27
      %s41 = sphi 0, %s43
      %s44 = sphi 0, %s41
      %s45 = sphi 0, %s44
      %s61 = sphi 0, %s45
      %s67 = sphi 0, %s69
      %s70 = sphi 0, %s67
      %s71 = sphi 0, %s70
      %s87 = sphi 0, %s71
      %s93 = sphi 0, %s95
      %s96 = sphi 0, %s93
      %s97 = sphi 0, %s96
      %s113 = sphi 0, %s97
      %s117 = sphi 0, %s117
      %s119 = sphi 0, %s117
      %s120 = sphi 0, %s119
      %s134 = sphi 0, %s120
      %s138 = sphi 0, %s138
      %s140 = sphi 0, %s138
      %s141 = sphi 0, %s140
      %s155 = sphi 0, %s141
      %s163 = sphi 0, %s165
      %s166 = sphi 0, %s163
      %s167 = sphi 0, %s166
      %s183 = sphi 0, %s167
    $region4: #{tpu_custom_call.1} parent=1 // loop_header_branch
      %20 = sbr.rel (%p18) target = $region8
    $region5: #{tpu_custom_call.1} parent=1 // loop_body
      %s22 = ssub.s32 %s17, 1
      %s23 = ssub.s32 %s17, 2
      %s30 = sadd.s32 1, %s25
      %p31 = scmp.ge.s32.totalorder %s30, 1
      %s32 = scalar_select %p31, 0, %s30
      %s33 = sadd.s32 1, %s24
      %s34 = scalar_select %p31, %s33, %s24
      %p35 = scmp.ge.s32.totalorder %s34, 2
      %s36 = scalar_select %p35, 0, %s34
      %s37 = ssub.s32 %s24, %s36
      %s38 = ssub.s32 %s25, %s32
      %s39 = sor.u32 %s37, %s38
      %p40 = scmp.eq.s32.totalorder %s39, 0
      %s42 = sadd.s32 %s41, 1
      %s43 = scalar_select %p40, %s41, %s42
      %p46 = pneg %p40
      %p47 = scmp.eq.s32.totalorder %s17, 1
      %p48 = por %p46, %p47
      %p49 = scmp.ne.s32.totalorder %s41, %s44
      %p50 = scmp.eq.s32.totalorder %s17, 0
      %p51 = por %p49, %p50
      %p52 = scmp.ne.s32.totalorder %s41, %s44
      %p53 = scmp.eq.s32.totalorder %s22, 1
      %p54 = por %p52, %p53
      %p55 = scmp.ne.s32.totalorder %s44, %s45
      %p56 = scmp.eq.s32.totalorder %s22, 0
      %p57 = por %p55, %p56
      %p58 = scmp.ne.s32.totalorder %s44, %s45
      %p59 = scmp.eq.s32.totalorder %s23, 1
      %p60 = por %p58, %p59
      %p62 = scmp.ne.s32.totalorder %s45, %s61
      %p63 = scmp.eq.s32.totalorder %s23, 0
      %p64 = por %p62, %p63
      %s65 = ssub.s32 %s24, %s36
      %p66 = scmp.eq.s32.totalorder %s65, 0
      %s68 = sadd.s32 %s67, 1
      %s69 = scalar_select %p66, %s67, %s68
      %p72 = pneg %p66
      %p73 = scmp.eq.s32.totalorder %s17, 1
      %p74 = por %p72, %p73
      %p75 = scmp.ne.s32.totalorder %s67, %s70
      %p76 = scmp.eq.s32.totalorder %s17, 0
      %p77 = por %p75, %p76
      %p78 = scmp.ne.s32.totalorder %s67, %s70
      %p79 = scmp.eq.s32.totalorder %s22, 1
      %p80 = por %p78, %p79
      %p81 = scmp.ne.s32.totalorder %s70, %s71
      %p82 = scmp.eq.s32.totalorder %s22, 0
      %p83 = por %p81, %p82
      %p84 = scmp.ne.s32.totalorder %s70, %s71
      %p85 = scmp.eq.s32.totalorder %s23, 1
      %p86 = por %p84, %p85
      %p88 = scmp.ne.s32.totalorder %s71, %s87
      %p89 = scmp.eq.s32.totalorder %s23, 0
      %p90 = por %p88, %p89
      %s91 = ssub.s32 %s24, %s36
      %p92 = scmp.eq.s32.totalorder %s91, 0
      %s94 = sadd.s32 %s93, 1
      %s95 = scalar_select %p92, %s93, %s94
      %p98 = pneg %p92
      %p99 = scmp.eq.s32.totalorder %s17, 1
      %p100 = por %p98, %p99
      %p101 = scmp.ne.s32.totalorder %s93, %s96
      %p102 = scmp.eq.s32.totalorder %s17, 0
      %p103 = por %p101, %p102
      %p104 = scmp.ne.s32.totalorder %s93, %s96
      %p105 = scmp.eq.s32.totalorder %s22, 1
      %p106 = por %p104, %p105
      %p107 = scmp.ne.s32.totalorder %s96, %s97
      %p108 = scmp.eq.s32.totalorder %s22, 0
      %p109 = por %p107, %p108
      %p110 = scmp.ne.s32.totalorder %s96, %s97
      %p111 = scmp.eq.s32.totalorder %s23, 1
      %p112 = por %p110, %p111
      %p114 = scmp.ne.s32.totalorder %s97, %s113
      %p115 = scmp.eq.s32.totalorder %s23, 0
      %p116 = por %p114, %p115
      %s118 = sadd.s32 %s117, 1
      %p121 = scmp.eq.s32.totalorder %s17, 1
      %p122 = scmp.ne.s32.totalorder %s117, %s119
      %p123 = scmp.eq.s32.totalorder %s17, 0
      %p124 = por %p122, %p123
      %p125 = scmp.ne.s32.totalorder %s117, %s119
      %p126 = scmp.eq.s32.totalorder %s22, 1
      %p127 = por %p125, %p126
      %p128 = scmp.ne.s32.totalorder %s119, %s120
      %p129 = scmp.eq.s32.totalorder %s22, 0
      %p130 = por %p128, %p129
      %p131 = scmp.ne.s32.totalorder %s119, %s120
      %p132 = scmp.eq.s32.totalorder %s23, 1
      %p133 = por %p131, %p132
      %p135 = scmp.ne.s32.totalorder %s120, %s134
      %p136 = scmp.eq.s32.totalorder %s23, 0
      %p137 = por %p135, %p136
      %s139 = sadd.s32 %s138, 1
      %p142 = scmp.eq.s32.totalorder %s17, 1
      %p143 = scmp.ne.s32.totalorder %s138, %s140
      %p144 = scmp.eq.s32.totalorder %s17, 0
      %p145 = por %p143, %p144
      %p146 = scmp.ne.s32.totalorder %s138, %s140
      %p147 = scmp.eq.s32.totalorder %s22, 1
      %p148 = por %p146, %p147
      %p149 = scmp.ne.s32.totalorder %s140, %s141
      %p150 = scmp.eq.s32.totalorder %s22, 0
      %p151 = por %p149, %p150
      %p152 = scmp.ne.s32.totalorder %s140, %s141
      %p153 = scmp.eq.s32.totalorder %s23, 1
      %p154 = por %p152, %p153
      %p156 = scmp.ne.s32.totalorder %s141, %s155
      %p157 = scmp.eq.s32.totalorder %s23, 0
      %p158 = por %p156, %p157
      %s159 = ssub.s32 %s24, %s36
      %s160 = ssub.s32 %s25, %s32
      %s161 = sor.u32 %s159, %s160
      %p162 = scmp.eq.s32.totalorder %s161, 0
      %s164 = sadd.s32 %s163, 1
      %s165 = scalar_select %p162, %s163, %s164
      %p168 = pneg %p162
      %p169 = scmp.eq.s32.totalorder %s17, 1
      %p170 = por %p168, %p169
      %p171 = scmp.ne.s32.totalorder %s163, %s166
      %p172 = scmp.eq.s32.totalorder %s17, 0
      %p173 = por %p171, %p172
      %p174 = scmp.ne.s32.totalorder %s163, %s166
      %p175 = scmp.eq.s32.totalorder %s22, 1
      %p176 = por %p174, %p175
      %p177 = scmp.ne.s32.totalorder %s166, %s167
      %p178 = scmp.eq.s32.totalorder %s22, 0
      %p179 = por %p177, %p178
      %p180 = scmp.ne.s32.totalorder %s166, %s167
      %p181 = scmp.eq.s32.totalorder %s23, 1
      %p182 = por %p180, %p181
      %p184 = scmp.ne.s32.totalorder %s167, %s183
      %p185 = scmp.eq.s32.totalorder %s23, 0
      %p186 = por %p184, %p185
      %p187 = scmp.le.s32.totalorder 1, %s17
      %p188 = scmp.lt.s32.totalorder %s17, 3
      %p189 = pnand %p187, %p188
      %p190 = pneg %p189
      // Predicated region
      $region9: #{tpu_custom_call.1} parent=5 // pred_check
        _
      $region10: #{tpu_custom_call.1} parent=5 // pred_check_branch
        %192 = sbr.rel (%p189) target = $region12
      $region11: #{tpu_custom_call.1} parent=5 // pred_region
        %s193 = ssub.s32 %s17, 1
        // Predicated region
        $region13: #{tpu_custom_call.1} parent=11 // pred_check
          %p194 = pneg %p130
        $region14: #{tpu_custom_call.1} parent=11 // pred_check_branch
          %196 = sbr.rel (%p194) target = $region16
        $region15: #{tpu_custom_call.1} parent=11 // pred_region
          _
        $region16: #{tpu_custom_call.1} parent=11 // pred_fallthru
          _
        // Predicated region
        $region17: #{tpu_custom_call.1} parent=11 // pred_check
          %p197 = pneg %p151
        $region18: #{tpu_custom_call.1} parent=11 // pred_check_branch
          %199 = sbr.rel (%p197) target = $region20
        $region19: #{tpu_custom_call.1} parent=11 // pred_region
          _
        $region20: #{tpu_custom_call.1} parent=11 // pred_fallthru
          _
      $region12: #{tpu_custom_call.1} parent=5 // pred_fallthru
        _
      %p200 = scmp.lt.s32.totalorder %s17, 2
      // Predicated region
      $region21: #{tpu_custom_call.1} parent=5 // pred_check
        %p201 = pneg %p200
      $region22: #{tpu_custom_call.1} parent=5 // pred_check_branch
        %203 = sbr.rel (%p201) target = $region24
      $region23: #{tpu_custom_call.1} parent=5 // pred_region
        // Predicated region
        $region25: #{tpu_custom_call.1} parent=23 // pred_check
          %p204 = pneg %p51
        $region26: #{tpu_custom_call.1} parent=23 // pred_check_branch
          %206 = sbr.rel (%p204) target = $region28
        $region27: #{tpu_custom_call.1} parent=23 // pred_region
          %s207 = sand.u32 %s41, 1
          %s208 = scalar_lea.sflag [#allocation3], %s207
          %s209 = sand.u32 %s41, 1
          %s210 = smul.addr %s209, 64
          %s211 = scalar_lea.vmem [#allocation2], %s210
          %s212 = smul.u32 2, %s25
          %s214 = ssub.s32 1024, 1024
          %215 = vsyncadd %s208, %s214
          %s216 = smul.addr %s24, 8
          %s217 = sadd.s32 %s212, %s216
          %s218 = smul.addr %s217, 128
          %s219 = scalar_lea.hbm %s0, %s218
          %s220 = sshll.u32 %s211, 4
          %s221 = int_to_ptr.vmem [resolvable:$true] %s220
          %226 = dma.hbm_to_vmem [thread:$0]  %s219, 1024, %s221, %s208, 256, 256, 16
        $region28: #{tpu_custom_call.1} parent=23 // pred_fallthru
          _
        // Predicated region
        $region29: #{tpu_custom_call.1} parent=23 // pred_check
          %p227 = pneg %p77
        $region30: #{tpu_custom_call.1} parent=23 // pred_check_branch
          %229 = sbr.rel (%p227) target = $region32
        $region31: #{tpu_custom_call.1} parent=23 // pred_region
          %p230 = scmp.lt.s32.totalorder %s24, 1
          %s231 = scalar_select %p230, %s24, 1
          %s232 = smul.addr %s231, 8
          %s233 = scalar_lea.vmem %s1, %s232
        $region32: #{tpu_custom_call.1} parent=23 // pred_fallthru
          _
        // Predicated region
        $region33: #{tpu_custom_call.1} parent=23 // pred_check
          %p234 = pneg %p103
        $region34: #{tpu_custom_call.1} parent=23 // pred_check_branch
          %236 = sbr.rel (%p234) target = $region36
        $region35: #{tpu_custom_call.1} parent=23 // pred_region
          %p237 = scmp.lt.s32.totalorder %s24, 1
          %s238 = scalar_select %p237, %s24, 1
          %s239 = smul.addr %s238, 4
          %s240 = smul.addr %s239, 8
          %s241 = scalar_lea.vmem %s2, %s240
        $region36: #{tpu_custom_call.1} parent=23 // pred_fallthru
          _
      $region24: #{tpu_custom_call.1} parent=5 // pred_fallthru
        _
      %p242 = scmp.le.s32.totalorder 1, %s17
      %p243 = scmp.lt.s32.totalorder %s17, 3
      %p244 = pnand %p242, %p243
      %p245 = pneg %p244
      // Predicated region
      $region37: #{tpu_custom_call.1} parent=5 // pred_check
        _
      $region38: #{tpu_custom_call.1} parent=5 // pred_check_branch
        %247 = sbr.rel (%p244) target = $region40
      $region39: #{tpu_custom_call.1} parent=5 // pred_region
        %s248 = ssub.s32 %s17, 1
        %s249 = sand.u32 %s44, 1
        %s250 = scalar_lea.sflag [#allocation3], %s249
        %s251 = sand.u32 %s44, 1
        %s252 = smul.addr %s251, 64
        %s253 = scalar_lea.vmem [#allocation2], %s252
        // Predicated region
        $region41: #{tpu_custom_call.1} parent=39 // pred_check
          %p254 = pneg %p57
        $region42: #{tpu_custom_call.1} parent=39 // pred_check_branch
          %256 = sbr.rel (%p254) target = $region44
        $region43: #{tpu_custom_call.1} parent=39 // pred_region
          %257 = dma.done %s250, 1024
        $region44: #{tpu_custom_call.1} parent=39 // pred_fallthru
          _
        %s258 = sand.u32 %s44, 1
        %s259 = scalar_lea.sflag [#allocation3], %s258
        %s260 = sand.u32 %s44, 1
        %s261 = smul.addr %s260, 64
        %s262 = scalar_lea.vmem [#allocation2], %s261
        %p263 = pneg %p57
        %p264 = pneg %p54
        %p265 = scmp.lt.s32.totalorder %s26, 1
        %s266 = scalar_select %p265, %s26, 1
        %s267 = smul.addr %s266, 8
        %s268 = scalar_lea.vmem %s1, %s267
        %p269 = pneg %p83
        %p270 = pneg %p80
        %p271 = scmp.lt.s32.totalorder %s26, 1
        %s272 = scalar_select %p271, %s26, 1
        %s273 = smul.addr %s272, 4
        %s274 = smul.addr %s273, 8
        %s275 = scalar_lea.vmem %s2, %s274
        %p276 = pneg %p109
        %p277 = pneg %p106
        %p278 = pneg %p130
        %p279 = pneg %p127
        %p280 = pneg %p151
        %p281 = pneg %p148
        %p282 = pneg %p179
        %p283 = pneg %p176
        %s284 = sand.u32 %s166, 1
        %s285 = scalar_lea.sflag [#allocation4], %s284
        %s286 = sand.u32 %s166, 1
        %s287 = smul.addr %s286, 64
        %s288 = scalar_lea.vmem [#allocation5], %s287
        %s289 = smul.u32 2, %s27
        %p290 = scmp.lt.s32.totalorder %s26, 1
        %s291 = scalar_select %p290, %s26, 1
        %s292 = smul.addr %s291, 8
        %s293 = scalar_lea.vmem %s1, %s292
        %p294 = scmp.lt.s32.totalorder %s26, 1
        %s295 = scalar_select %p294, %s26, 1
        %s296 = smul.addr %s295, 4
        %s297 = smul.addr %s296, 8
        %s298 = scalar_lea.vmem %s2, %s297
        %s299 = smul.u32 2, %s27
        %v300 = vld [vmem:[%s253] sm:$0xff]
        %v301 = vld [vmem:[%s253 + $0x8] sm:$0xff]
        %v302 = vld [vmem:[%s253 + $0x10] sm:$0xff]
        %v303 = vld [vmem:[%s253 + $0x18] sm:$0xff]
        %v304 = vld [vmem:[%s253 + $0x20] sm:$0xff]
        %v305 = vld [vmem:[%s253 + $0x28] sm:$0xff]
        %v306 = vld [vmem:[%s253 + $0x30] sm:$0xff]
        %v307 = vld [vmem:[%s253 + $0x38] sm:$0xff]
        %v308 = vld [vmem:[%s3] sm:$0xff]
        %v309 = vld [vmem:[%s3 + $0x8] sm:$0xff]
        %v310 = vld [vmem:[%s3 + $0x10] sm:$0xff]
        %v311 = vld [vmem:[%s3 + $0x18] sm:$0xff]
        %v312 = vld [vmem:[%s4] sm:$0xff]
        %v313 = vld [vmem:[%s4 + $0x8] sm:$0xff]
        %v314 = vld [vmem:[%s4 + $0x10] sm:$0xff]
        %v315 = vld [vmem:[%s4 + $0x18] sm:$0xff]
        %317 = vset.pattern.permute.xlu0 0
        %318 = vperm.xlu0 %317, %v312
        %v319 = vpop.permute.xlu0 %318
        %322 = vset.pattern.permute.xlu0 0
        %323 = vperm.xlu0 %322, %v313
        %v324 = vpop.permute.xlu0 %323
        %327 = vset.pattern.permute.xlu0 0
        %328 = vperm.xlu0 %327, %v314
        %v329 = vpop.permute.xlu0 %328
        %332 = vset.pattern.permute.xlu0 0
        %333 = vperm.xlu0 %332, %v315
        %v334 = vpop.permute.xlu0 %333
        %vm336 = vcmask 261120
        %v338 = vsel %vm336, %v308, 0
        %v341 = vsel %vm336, %v309, 0
        %v344 = vsel %vm336, %v310, 0
        %v347 = vsel %vm336, %v311, 0
        %349 = vmatprep.subr.mxu0 0.0
        %350 = vmatpush1.msra.mxu0 0.0
        %351 = vmatprep.subr.mxu0 0.0
        %352 = vmatpush1.msra.mxu0 0.0
        %353 = vmatprep.subr.mxu0 0.0
        %354 = vmatpush1.msra.mxu0 0.0
        %355 = vmatprep.subr.mxu0 0.0
        %356 = vmatpush1.msra.mxu0 0.0
        %357 = vmatprep.subr.mxu0 0.0
        %358 = vmatpush1.msra.mxu0 0.0
        %359 = vmatprep.subr.mxu0 0.0
        %360 = vmatpush1.msra.mxu0 0.0
        %361 = vmatprep.subr.mxu0 0.0
        %362 = vmatpush1.msra.mxu0 0.0
        %363 = vmatprep.subr.mxu0 0.0
        %364 = vmatpush1.msra.mxu0 0.0
        %365 = vmatprep.subr.mxu0 0.0
        %366 = vmatpush1.msra.mxu0 0.0
        %367 = vmatprep.subr.mxu0 0.0
        %368 = vmatpush1.msra.mxu0 0.0
        %369 = vmatprep.subr.mxu0 0.0
        %370 = vmatpush1.msra.mxu0 0.0
        %371 = vmatprep.subr.mxu0 0.0
        %372 = vmatpush1.msra.mxu0 0.0
        %373 = vmatprep.subr.mxu0 %v307
        %374 = vmatpush1.msra.mxu0 %v306
        %375 = vmatprep.subr.mxu0 %v305
        %376 = vmatpush1.msra.mxu0 %v304
        %377 = vmatprep.subr.mxu0 %v303
        %378 = vmatpush1.msra.mxu0 %v302
        %379 = vmatprep.subr.mxu0 %v301
        %380 = vmatpush1.msra.mxu0 %v300
        %381 = vmatprep.subr.mxu0 0.0
        %382 = vmatpush2.msra.mxu0 0.0
        %383 = vmatprep.subr.mxu0 0.0
        %384 = vmatpush2.msra.mxu0 0.0
        %385 = vmatprep.subr.mxu0 0.0
        %386 = vmatpush2.msra.mxu0 0.0
        %387 = vmatprep.subr.mxu0 0.0
        %388 = vmatpush2.msra.mxu0 0.0
        %389 = vmatprep.subr.mxu0 0.0
        %390 = vmatpush2.msra.mxu0 0.0
        %391 = vmatprep.subr.mxu0 0.0
        %392 = vmatpush2.msra.mxu0 0.0
        %393 = vmatprep.subr.mxu0 0.0
        %394 = vmatpush2.msra.mxu0 0.0
        %395 = vmatprep.subr.mxu0 0.0
        %396 = vmatpush2.msra.mxu0 0.0
        %397 = vmatprep.subr.mxu0 0.0
        %398 = vmatpush2.msra.mxu0 0.0
        %399 = vmatprep.subr.mxu0 0.0
        %400 = vmatpush2.msra.mxu0 0.0
        %401 = vmatprep.subr.mxu0 0.0
        %402 = vmatpush2.msra.mxu0 0.0
        %403 = vmatprep.subr.mxu0 0.0
        %404 = vmatpush2.msra.mxu0 0.0
        %405 = vmatprep.subr.mxu0 0.0
        %406 = vmatpush2.msra.mxu0 0.0
        %407 = vmatprep.subr.mxu0 0.0
        %408 = vmatpush2.msra.mxu0 0.0
        %409 = vmatprep.subr.mxu0 0.0
        %410 = vmatpush2.msra.mxu0 0.0
        %411 = vmatprep.subr.mxu0 0.0
        %412 = vmatpush2.msra.mxu0 0.0
        %413 = vmatprep.mubr.f32.mxu0 0.0
        %414 = vmatmul.mubr.f32.gmra.mxu0 %v338
        %v415 = vpop.f32.mrf.mxu0
        %v416 = vadd.f32 %v319, %v415
        %v417 = vpop.f32.mrf.mxu0
        %v418 = vadd.f32 %v319, %v417
        %419 = vmatprep.mubr.f32.mxu0 0.0
        %420 = vmatmul.mubr.f32.gmra.mxu0 %v341
        %v421 = vpop.f32.mrf.mxu0
        %v422 = vadd.f32 %v324, %v421
        %v423 = vpop.f32.mrf.mxu0
        %v424 = vadd.f32 %v324, %v423
        %425 = vmatprep.mubr.f32.mxu0 0.0
        %426 = vmatmul.mubr.f32.gmra.mxu0 %v344
        %v427 = vpop.f32.mrf.mxu0
        %v428 = vadd.f32 %v329, %v427
        %v429 = vpop.f32.mrf.mxu0
        %v430 = vadd.f32 %v329, %v429
        %431 = vmatprep.mubr.f32.mxu0 0.0
        %432 = vmatmul.mubr.f32.gmra.mxu0 %v347
        %v433 = vpop.f32.mrf.mxu0
        %v434 = vadd.f32 %v334, %v433
        %v435 = vpop.f32.mrf.mxu0
        %v436 = vadd.f32 %v334, %v435
        %437 = vdwg.mxu0
        %v438 = vld [vmem:[%s293] sm:$0xff]
        %v440 = vsel %vm336, %v438, 0
        %442 = vmatprep.subr.mxu0 0.0
        %443 = vmatpush1.msra.mxu0 0.0
        %444 = vmatprep.subr.mxu0 0.0
        %445 = vmatpush1.msra.mxu0 0.0
        %446 = vmatprep.subr.mxu0 0.0
        %447 = vmatpush1.msra.mxu0 0.0
        %448 = vmatprep.subr.mxu0 0.0
        %449 = vmatpush1.msra.mxu0 0.0
        %450 = vmatprep.subr.mxu0 0.0
        %451 = vmatpush1.msra.mxu0 0.0
        %452 = vmatprep.subr.mxu0 0.0
        %453 = vmatpush1.msra.mxu0 0.0
        %454 = vmatprep.subr.mxu0 0.0
        %455 = vmatpush1.msra.mxu0 0.0
        %456 = vmatprep.subr.mxu0 0.0
        %457 = vmatpush1.msra.mxu0 0.0
        %458 = vmatprep.subr.mxu0 0.0
        %459 = vmatpush1.msra.mxu0 0.0
        %460 = vmatprep.subr.mxu0 0.0
        %461 = vmatpush1.msra.mxu0 0.0
        %462 = vmatprep.subr.mxu0 0.0
        %463 = vmatpush1.msra.mxu0 0.0
        %464 = vmatprep.subr.mxu0 0.0
        %465 = vmatpush1.msra.mxu0 0.0
        %466 = vmatprep.subr.mxu0 %v436
        %467 = vmatpush1.msra.mxu0 %v434
        %468 = vmatprep.subr.mxu0 %v430
        %469 = vmatpush1.msra.mxu0 %v428
        %470 = vmatprep.subr.mxu0 %v424
        %471 = vmatpush1.msra.mxu0 %v422
        %472 = vmatprep.subr.mxu0 %v418
        %473 = vmatpush1.msra.mxu0 %v416
        %474 = vmatprep.subr.mxu0 0.0
        %475 = vmatpush2.msra.mxu0 0.0
        %476 = vmatprep.subr.mxu0 0.0
        %477 = vmatpush2.msra.mxu0 0.0
        %478 = vmatprep.subr.mxu0 0.0
        %479 = vmatpush2.msra.mxu0 0.0
        %480 = vmatprep.subr.mxu0 0.0
        %481 = vmatpush2.msra.mxu0 0.0
        %482 = vmatprep.subr.mxu0 0.0
        %483 = vmatpush2.msra.mxu0 0.0
        %484 = vmatprep.subr.mxu0 0.0
        %485 = vmatpush2.msra.mxu0 0.0
        %486 = vmatprep.subr.mxu0 0.0
        %487 = vmatpush2.msra.mxu0 0.0
        %488 = vmatprep.subr.mxu0 0.0
        %489 = vmatpush2.msra.mxu0 0.0
        %490 = vmatprep.subr.mxu0 0.0
        %491 = vmatpush2.msra.mxu0 0.0
        %492 = vmatprep.subr.mxu0 0.0
        %493 = vmatpush2.msra.mxu0 0.0
        %494 = vmatprep.subr.mxu0 0.0
        %495 = vmatpush2.msra.mxu0 0.0
        %496 = vmatprep.subr.mxu0 0.0
        %497 = vmatpush2.msra.mxu0 0.0
        %498 = vmatprep.subr.mxu0 0.0
        %499 = vmatpush2.msra.mxu0 0.0
        %500 = vmatprep.subr.mxu0 0.0
        %501 = vmatpush2.msra.mxu0 0.0
        %502 = vmatprep.subr.mxu0 0.0
        %503 = vmatpush2.msra.mxu0 0.0
        %504 = vmatprep.subr.mxu0 0.0
        %505 = vmatpush2.msra.mxu0 0.0
        %506 = vmatprep.mubr.f32.mxu0 0.0
        %507 = vmatmul.mubr.f32.gmra.mxu0 %v440
        %v508 = vpop.f32.mrf.mxu0
        %v509 = vadd.f32 0.0, %v508
        %v510 = vpop.f32.mrf.mxu0
        %v511 = vadd.f32 0.0, %v510
        %512 = vdwg.mxu0
        %v513 = vrot.slane %v509, 4
        %v514 = vmax.f32 %v509, %v513
        %v515 = vrot.slane %v514, 2
        %v516 = vmax.f32 %v514, %v515
        %v517 = vrot.slane %v516, 1
        %v518 = vmax.f32 %v516, %v517
        %v519 = vrot.slane %v511, 4
        %v520 = vmax.f32 %v511, %v519
        %v521 = vrot.slane %v520, 2
        %v522 = vmax.f32 %v520, %v521
        %v523 = vrot.slane %v522, 1
        %v524 = vmax.f32 %v522, %v523
        %v525 = vsub.f32 %v509, %v518
        %v526 = vsub.f32 %v511, %v524
        %v527 = vmul.f32 %v525, 1.442695
        %v528 = vpow.pop %v527
        %v529 = vmul.f32 %v526, 1.442695
        %v530 = vpow.pop %v529
        %v531 = vrot.slane %v528, 4
        %v532 = vadd.f32 %v528, %v531
        %v533 = vrot.slane %v532, 2
        %v534 = vadd.f32 %v532, %v533
        %v535 = vrot.slane %v534, 1
        %v536 = vadd.f32 %v534, %v535
        %v537 = vrot.slane %v530, 4
        %v538 = vadd.f32 %v530, %v537
        %v539 = vrot.slane %v538, 2
        %v540 = vadd.f32 %v538, %v539
        %v541 = vrot.slane %v540, 1
        %v542 = vadd.f32 %v540, %v541
        %v543 = vrcp.pop %v536
        %v544 = vmul.f32 %v528, %v543
        %v545 = vrcp.pop %v542
        %v546 = vmul.f32 %v530, %v545
        %v547 = vld [vmem:[%s298] sm:$0xff]
        %v548 = vld [vmem:[%s298 + $0x8] sm:$0xff]
        %v549 = vld [vmem:[%s298 + $0x10] sm:$0xff]
        %v550 = vld [vmem:[%s298 + $0x18] sm:$0xff]
        %vm551 = vcmask 64512
        %v553 = vsel %vm551, %v547, 0
        %v556 = vsel %vm551, %v548, 0
        %v559 = vsel %vm551, %v549, 0
        %v562 = vsel %vm551, %v550, 0
        %564 = vmatprep.subr.mxu0 0.0
        %565 = vmatpush1.msra.mxu0 0.0
        %566 = vmatprep.subr.mxu0 0.0
        %567 = vmatpush1.msra.mxu0 0.0
        %568 = vmatprep.subr.mxu0 0.0
        %569 = vmatpush1.msra.mxu0 0.0
        %570 = vmatprep.subr.mxu0 0.0
        %571 = vmatpush1.msra.mxu0 0.0
        %572 = vmatprep.subr.mxu0 0.0
        %573 = vmatpush1.msra.mxu0 0.0
        %574 = vmatprep.subr.mxu0 0.0
        %575 = vmatpush1.msra.mxu0 0.0
        %576 = vmatprep.subr.mxu0 0.0
        %577 = vmatpush1.msra.mxu0 0.0
        %578 = vmatprep.subr.mxu0 0.0
        %579 = vmatpush1.msra.mxu0 0.0
        %580 = vmatprep.subr.mxu0 0.0
        %581 = vmatpush1.msra.mxu0 0.0
        %582 = vmatprep.subr.mxu0 0.0
        %583 = vmatpush1.msra.mxu0 0.0
        %584 = vmatprep.subr.mxu0 0.0
        %585 = vmatpush1.msra.mxu0 0.0
        %586 = vmatprep.subr.mxu0 0.0
        %587 = vmatpush1.msra.mxu0 0.0
        %588 = vmatprep.subr.mxu0 0.0
        %589 = vmatpush1.msra.mxu0 0.0
        %590 = vmatprep.subr.mxu0 0.0
        %591 = vmatpush1.msra.mxu0 0.0
        %592 = vmatprep.subr.mxu0 0.0
        %593 = vmatpush1.msra.mxu0 0.0
        %594 = vmatprep.subr.mxu0 %v546
        %595 = vmatpush1.msra.mxu0 %v544
        %596 = vmatprep.subr.mxu0 0.0
        %597 = vmatpush2.msra.mxu0 0.0
        %598 = vmatprep.subr.mxu0 0.0
        %599 = vmatpush2.msra.mxu0 0.0
        %600 = vmatprep.subr.mxu0 0.0
        %601 = vmatpush2.msra.mxu0 0.0
        %602 = vmatprep.subr.mxu0 0.0
        %603 = vmatpush2.msra.mxu0 0.0
        %604 = vmatprep.subr.mxu0 0.0
        %605 = vmatpush2.msra.mxu0 0.0
        %606 = vmatprep.subr.mxu0 0.0
        %607 = vmatpush2.msra.mxu0 0.0
        %608 = vmatprep.subr.mxu0 0.0
        %609 = vmatpush2.msra.mxu0 0.0
        %610 = vmatprep.subr.mxu0 0.0
        %611 = vmatpush2.msra.mxu0 0.0
        %612 = vmatprep.subr.mxu0 0.0
        %613 = vmatpush2.msra.mxu0 0.0
        %614 = vmatprep.subr.mxu0 0.0
        %615 = vmatpush2.msra.mxu0 0.0
        %616 = vmatprep.subr.mxu0 0.0
        %617 = vmatpush2.msra.mxu0 0.0
        %618 = vmatprep.subr.mxu0 0.0
        %619 = vmatpush2.msra.mxu0 0.0
        %620 = vmatprep.subr.mxu0 0.0
        %621 = vmatpush2.msra.mxu0 0.0
        %622 = vmatprep.subr.mxu0 0.0
        %623 = vmatpush2.msra.mxu0 0.0
        %624 = vmatprep.subr.mxu0 0.0
        %625 = vmatpush2.msra.mxu0 0.0
        %626 = vmatprep.subr.mxu0 0.0
        %627 = vmatpush2.msra.mxu0 0.0
        %628 = vmatprep.mubr.f32.mxu0 0.0
        %629 = vmatmul.mubr.f32.gmra.mxu0 %v553
        %v630 = vpop.f32.mrf.mxu0
        %v631 = vadd.f32 0.0, %v630
        %v632 = vpop.f32.mrf.mxu0
        %v633 = vadd.f32 0.0, %v632
        %634 = vmatprep.mubr.f32.mxu0 0.0
        %635 = vmatmul.mubr.f32.gmra.mxu0 %v556
        %v636 = vpop.f32.mrf.mxu0
        %v637 = vadd.f32 0.0, %v636
        %v638 = vpop.f32.mrf.mxu0
        %v639 = vadd.f32 0.0, %v638
        %640 = vmatprep.mubr.f32.mxu0 0.0
        %641 = vmatmul.mubr.f32.gmra.mxu0 %v559
        %v642 = vpop.f32.mrf.mxu0
        %v643 = vadd.f32 0.0, %v642
        %v644 = vpop.f32.mrf.mxu0
        %v645 = vadd.f32 0.0, %v644
        %646 = vmatprep.mubr.f32.mxu0 0.0
        %647 = vmatmul.mubr.f32.gmra.mxu0 %v562
        %v648 = vpop.f32.mrf.mxu0
        %v649 = vadd.f32 0.0, %v648
        %v650 = vpop.f32.mrf.mxu0
        %v651 = vadd.f32 0.0, %v650
        %652 = vdwg.mxu0
        %v653 = vadd.f32 %v300, %v631
        %v654 = vadd.f32 %v301, %v633
        %v655 = vadd.f32 %v302, %v637
        %v656 = vadd.f32 %v303, %v639
        %v657 = vadd.f32 %v304, %v643
        %v658 = vadd.f32 %v305, %v645
        %v659 = vadd.f32 %v306, %v649
        %v660 = vadd.f32 %v307, %v651
        %661 = vst [vmem:[%s288] sm:$0xff] %v653
        %662 = vst [vmem:[%s288 + $0x8] sm:$0xff] %v654
        %663 = vst [vmem:[%s288 + $0x10] sm:$0xff] %v655
        %664 = vst [vmem:[%s288 + $0x18] sm:$0xff] %v656
        %665 = vst [vmem:[%s288 + $0x20] sm:$0xff] %v657
        %666 = vst [vmem:[%s288 + $0x28] sm:$0xff] %v658
        %667 = vst [vmem:[%s288 + $0x30] sm:$0xff] %v659
        %668 = vst [vmem:[%s288 + $0x38] sm:$0xff] %v660
        %s669 = sand.u32 %s166, 1
        %s670 = scalar_lea.sflag [#allocation4], %s669
        %s671 = sand.u32 %s166, 1
        %s672 = smul.addr %s671, 64
        %s673 = scalar_lea.vmem [#allocation5], %s672
        // Predicated region
        $region45: #{tpu_custom_call.1} parent=39 // pred_check
          %p674 = pneg %p176
        $region46: #{tpu_custom_call.1} parent=39 // pred_check_branch
          %676 = sbr.rel (%p674) target = $region48
        $region47: #{tpu_custom_call.1} parent=39 // pred_region
          %s677 = smul.u32 2, %s27
          %s679 = ssub.s32 1024, 1024
          %680 = vsyncadd %s670, %s679
          %s681 = smul.addr %s26, 8
          %s682 = sadd.s32 %s677, %s681
          %s683 = smul.addr %s682, 128
          %s684 = scalar_lea.hbm %s5, %s683
          %s685 = sshll.u32 %s673, 4
          %s686 = int_to_ptr.vmem [resolvable:$true] %s685
          %691 = dma.vmem_to_hbm [thread:$0]  %s686, 1024, %s684, %s670, 256, 256, 16
        $region48: #{tpu_custom_call.1} parent=39 // pred_fallthru
          _
      $region40: #{tpu_custom_call.1} parent=5 // pred_fallthru
        _
      %p692 = scmp.le.s32.totalorder 2, %s17
      // Predicated region
      $region49: #{tpu_custom_call.1} parent=5 // pred_check
        %p693 = pneg %p692
      $region50: #{tpu_custom_call.1} parent=5 // pred_check_branch
        %695 = sbr.rel (%p693) target = $region52
      $region51: #{tpu_custom_call.1} parent=5 // pred_region
        %s696 = ssub.s32 %s17, 2
        // Predicated region
        $region53: #{tpu_custom_call.1} parent=51 // pred_check
          %p697 = pneg %p182
        $region54: #{tpu_custom_call.1} parent=51 // pred_check_branch
          %699 = sbr.rel (%p697) target = $region56
        $region55: #{tpu_custom_call.1} parent=51 // pred_region
          %s700 = sand.u32 %s167, 1
          %s701 = scalar_lea.sflag [#allocation4], %s700
          %s702 = sand.u32 %s167, 1
          %s703 = smul.addr %s702, 64
          %s704 = scalar_lea.vmem [#allocation5], %s703
          %705 = dma.done %s701, 1024
        $region56: #{tpu_custom_call.1} parent=51 // pred_fallthru
          _
      $region52: #{tpu_custom_call.1} parent=5 // pred_fallthru
        _
    $region6: #{tpu_custom_call.1} parent=1 // loop_footer
      %s21 = sadd.s32 1, %s17
    $region7: #{tpu_custom_call.1} parent=1 // loop_footer_branch
      %16 = sbr.rel target = $region3
    $region8: #{tpu_custom_call.1} parent=1 // loop_exit
      _
    %706 = vsyncpa [#allocation3], 1
    %s707 = scalar_lea.sflag [#allocation3], 1
    %708 = vsyncpa %s707, 1
    %709 = vsyncpa [#allocation4], 1
    %s710 = scalar_lea.sflag [#allocation4], 1
    %711 = vsyncpa %s710, 1

</llo_original>
